<compile_context>
chip_gen: v6e
topology: v6e:2x2x1
jax: 0.10.0
libtpu: 0.0.40
codegen_flags: <defaults>
</compile_context>

<pallas_src>
import functools

import jax
import jax.numpy as jnp
from jax.experimental import pallas as pl
from jax.experimental.pallas import tpu as pltpu

_SUBLANE = 8


def _round_up(x, m):
    return ((x + m - 1) // m) * m


def qnetwork_kernel(x_ref, w1_ref, b1_ref, w2_ref, b2_ref, w3_ref, b3_ref, out_ref):
    # Cast the activation stream to the (possibly bf16) weight dtype in VMEM
    # (free relative to an extra HBM pass in the wrapper; no-op for f32).
    x = x_ref[...].astype(w1_ref.dtype)
    # fc1 + ReLU (accumulate in f32; bias/ReLU in f32 regardless of input dtype).
    h1 = jnp.dot(x, w1_ref[...], preferred_element_type=jnp.float32) + b1_ref[...]
    h1 = jnp.maximum(h1, 0.0).astype(w2_ref.dtype)
    # fc2 + ReLU
    h2 = jnp.dot(h1, w2_ref[...], preferred_element_type=jnp.float32) + b2_ref[...]
    h2 = jnp.maximum(h2, 0.0).astype(w3_ref.dtype)
    # fc3 (no activation). Output block is (tm, action_size): narrow, unpadded.
    out_ref[...] = (
        jnp.dot(h2, w3_ref[...], preferred_element_type=jnp.float32) + b3_ref[...]
    ).astype(out_ref.dtype)


@functools.partial(jax.jit, static_argnames=("block_m", "use_bf16"))
def qnetwork_forward(state, params, *, block_m=8192, use_bf16=False):
    """state: (B, state_size). params: dict of w1,b1,w2,b2,w3,b3.

    Returns (B, action_size) f32 Q-values, matching the PyTorch QNetwork forward.
    (bf16 path intentionally quantizes weights; looser tolerance applies.)
    """
    B, state_size = state.shape
    fc1 = params["w1"].shape[1]
    fc2 = params["w2"].shape[1]
    action_size = params["w3"].shape[1]

    w_dtype = jnp.bfloat16 if use_bf16 else jnp.float32
    w_bytes = 2 if use_bf16 else 4
    x_bytes = state.dtype.itemsize

    # Weights are tiny: a one-shot cast is fine. Biases stay f32 (f32 accumulator).
    w1 = params["w1"].astype(w_dtype)
    w2 = params["w2"].astype(w_dtype)
    w3 = params["w3"].astype(w_dtype)
    b1 = params["b1"].astype(jnp.float32)
    b2 = params["b2"].astype(jnp.float32)
    b3 = params["b3"].astype(jnp.float32)

    # Batch tile: multiple of 8 sublanes, capped at block_m, and <= ceil(B/2) so
    # the grid has >= 2 steps whenever B is large (v7x has 2 TensorCores).
    tm = min(block_m, _round_up(max(-(-B // 2), _SUBLANE), _SUBLANE))

    # --- Generation-aware VMEM budget (64 MiB on v7x, 128 MiB on v5e/v6e). ---
    try:
        vmem_cap = int(pltpu.get_tpu_info().vmem_capacity_bytes)
    except Exception:  # pragma: no cover - conservative fallback
        vmem_cap = 64 << 20

    weight_bytes = (
        (state_size * fc1 + fc1 * fc2 + fc2 * action_size) * w_bytes
        + (fc1 + fc2 + action_size) * 4
    )

    def vmem_est(t):
        return (
            2 * t * state_size * x_bytes   # double-buffered x tiles
            + 2 * t * action_size * 4      # double-buffered (narrow) out tiles
            + 2 * weight_bytes             # resident weights/biases (x2 conservative)
            + t * (fc1 + fc2) * 4          # f32 intermediate activations
        )

    # Shrink tile if a caller-supplied block_m would not fit this generation.
    while tm > _SUBLANE and vmem_est(tm) > int(0.6 * vmem_cap):
        tm = _round_up(tm // 2, _SUBLANE)

    grid = (pl.cdiv(B, tm),)
    vmem_limit = int(
        min(max(2 * vmem_est(tm) + (2 << 20), 8 << 20), int(0.75 * vmem_cap))
    )

    flops = 2 * B * (state_size * fc1 + fc1 * fc2 + fc2 * action_size)
    bytes_accessed = B * state_size * x_bytes + B * action_size * 4 + weight_bytes

    const_map = lambda i: (0, 0)
    return pl.pallas_call(
        qnetwork_kernel,
        out_shape=jax.ShapeDtypeStruct((B, action_size), jnp.float32),
        grid=grid,
        in_specs=[
            pl.BlockSpec((tm, state_size), lambda i: (i, 0)),  # x: streamed per tile
            pl.BlockSpec((state_size, fc1), const_map),        # w1 (resident)
            pl.BlockSpec((1, fc1), const_map),                 # b1
            pl.BlockSpec((fc1, fc2), const_map),               # w2
            pl.BlockSpec((1, fc2), const_map),                 # b2
            pl.BlockSpec((fc2, action_size), const_map),       # w3
            pl.BlockSpec((1, action_size), const_map),         # b3
        ],
        out_specs=pl.BlockSpec((tm, action_size), lambda i: (i, 0)),
        compiler_params=pltpu.CompilerParams(
            dimension_semantics=("parallel",),
            vmem_limit_bytes=vmem_limit,
        ),
        cost_estimate=pl.CostEstimate(
            flops=int(flops), transcendentals=0, bytes_accessed=int(bytes_accessed)
        ),
    )(state, w1, b1, w2, b2, w3, b3)


def init_params(key, state_size, action_size, fc1_nodes=64, fc2_nodes=32):
    """Deterministic init mimicking PyTorch nn.Linear default U(-1/sqrt(fan_in), 1/sqrt(fan_in))."""
    def linear(k, fan_in, fan_out):
        kw, kb = jax.random.split(k)
        bound = 1.0 / jnp.sqrt(float(fan_in))
        w = jax.random.uniform(kw, (fan_in, fan_out), jnp.float32, -bound, bound)
        b = jax.random.uniform(kb, (1, fan_out), jnp.float32, -bound, bound)
        return w, b

    k1, k2, k3 = jax.random.split(key, 3)
    w1, b1 = linear(k1, state_size, fc1_nodes)
    w2, b2 = linear(k2, fc1_nodes, fc2_nodes)
    w3, b3 = linear(k3, fc2_nodes, action_size)
    return {"w1": w1, "b1": b1, "w2": w2, "b2": b2, "w3": w3, "b3": b3}


def _reference(state, params):
    h1 = jnp.maximum(state @ params["w1"] + params["b1"], 0.0)
    h2 = jnp.maximum(h1 @ params["w2"] + params["b2"], 0.0)
    return h2 @ params["w3"] + params["b3"]


if __name__ == "__main__":
    key = jax.random.PRNGKey(0)
    k_params, k_state, k_big = jax.random.split(key, 3)

    # Small shapes consistent with the module: state_size=8, action_size=4, batch=2.
    B, state_size, action_size = 2, 8, 4
    params = init_params(k_params, state_size, action_size, fc1_nodes=64, fc2_nodes=32)
    state = jax.random.normal(k_state, (B, state_size), jnp.float32)

    # f32 path, strict check.
    q = jax.block_until_ready(qnetwork_forward(state, params))
    ref = _reference(state, params)
    assert q.shape == (B, action_size)
    assert jnp.allclose(q, ref, atol=1e-5, rtol=1e-5)

    # Larger batch exercising a multi-step, ragged batch grid (no wrapper pad).
    Bb = 1111  # deliberately not a multiple of the tile size
    big_state = jax.random.normal(k_big, (Bb, state_size), jnp.float32)
    q_big = jax.block_until_ready(qnetwork_forward(big_state, params))
    ref_big = _reference(big_state, params)
    assert q_big.shape == (Bb, action_size)
    assert jnp.allclose(q_big, ref_big, atol=1e-4, rtol=1e-4)

    # bf16 weight path (x streams f32 from HBM, cast in-VMEM), loose check.
    q_bf16 = jax.block_until_ready(qnetwork_forward(big_state, params, use_bf16=True))
    assert jnp.allclose(q_bf16, ref_big, atol=5e-2, rtol=5e-2)

    print("KERNEL_OK")
</pallas_src>

<mosaic_0001>
module attributes {stable_mosaic.version = 11 : i64} {
  func.func @qnetwork_kernel(%arg0: i32, %arg1: memref<8x8xf32, #tpu.memory_space<vmem>>, %arg2: memref<8x64xf32, #tpu.memory_space<vmem>>, %arg3: memref<1x64xf32, #tpu.memory_space<vmem>>, %arg4: memref<64x32xf32, #tpu.memory_space<vmem>>, %arg5: memref<1x32xf32, #tpu.memory_space<vmem>>, %arg6: memref<32x4xf32, #tpu.memory_space<vmem>>, %arg7: memref<1x4xf32, #tpu.memory_space<vmem>>, %arg8: memref<8x4xf32, #tpu.memory_space<vmem>>) attributes {dimension_semantics = [#tpu.dimension_semantics<parallel>], iteration_bounds = array<i64: 1>, scalar_prefetch = 0 : i64, scratch_operands = 0 : i64, tpu.core_type = #tpu.core_type<tc>, window_params = [{transform_indices = @transform_0, window_bounds = array<i64: 8, 8>}, {pipeline_mode = #tpu.pipeline_mode<synchronous>, transform_indices = @transform_1, window_bounds = array<i64: 8, 64>}, {pipeline_mode = #tpu.pipeline_mode<synchronous>, transform_indices = @transform_2, window_bounds = array<i64: 1, 64>}, {pipeline_mode = #tpu.pipeline_mode<synchronous>, transform_indices = @transform_3, window_bounds = array<i64: 64, 32>}, {pipeline_mode = #tpu.pipeline_mode<synchronous>, transform_indices = @transform_4, window_bounds = array<i64: 1, 32>}, {pipeline_mode = #tpu.pipeline_mode<synchronous>, transform_indices = @transform_5, window_bounds = array<i64: 32, 4>}, {pipeline_mode = #tpu.pipeline_mode<synchronous>, transform_indices = @transform_6, window_bounds = array<i64: 1, 4>}, {transform_indices = @transform_7, window_bounds = array<i64: 8, 4>}]} {
    %c0 = arith.constant 0 : index
    %c0_0 = arith.constant 0 : index
    %0 = vector.load %arg1[%c0, %c0_0] : memref<8x8xf32, #tpu.memory_space<vmem>>, vector<8x8xf32>
    %c0_1 = arith.constant 0 : index
    %c0_2 = arith.constant 0 : index
    %1 = vector.load %arg2[%c0_1, %c0_2] : memref<8x64xf32, #tpu.memory_space<vmem>>, vector<8x64xf32>
    %cst = arith.constant dense<0.000000e+00> : vector<8x64xf32>
    %2 = tpu.matmul %0, %1, %cst {dimension_numbers = #tpu.dot_dimension_numbers<[1], [0], [0], [1], [0, 0, 1, 1], [], []>} : vector<8x8xf32>, vector<8x64xf32>, vector<8x64xf32> -> vector<8x64xf32>
    %c0_3 = arith.constant 0 : index
    %c0_4 = arith.constant 0 : index
    %3 = vector.load %arg3[%c0_3, %c0_4] : memref<1x64xf32, #tpu.memory_space<vmem>>, vector<1x64xf32>
    %4 = vector.broadcast %3 : vector<1x64xf32> to vector<8x64xf32>
    %5 = arith.addf %2, %4 : vector<8x64xf32>
    %cst_5 = arith.constant 0.000000e+00 : f32
    %6 = vector.broadcast %cst_5 : f32 to vector<8x64xf32>
    %7 = arith.maximumf %5, %6 : vector<8x64xf32>
    %c0_6 = arith.constant 0 : index
    %c0_7 = arith.constant 0 : index
    %8 = vector.load %arg4[%c0_6, %c0_7] : memref<64x32xf32, #tpu.memory_space<vmem>>, vector<64x32xf32>
    %cst_8 = arith.constant dense<0.000000e+00> : vector<8x32xf32>
    %9 = tpu.matmul %7, %8, %cst_8 {dimension_numbers = #tpu.dot_dimension_numbers<[1], [0], [0], [1], [0, 0, 1, 1], [], []>} : vector<8x64xf32>, vector<64x32xf32>, vector<8x32xf32> -> vector<8x32xf32>
    %c0_9 = arith.constant 0 : index
    %c0_10 = arith.constant 0 : index
    %10 = vector.load %arg5[%c0_9, %c0_10] : memref<1x32xf32, #tpu.memory_space<vmem>>, vector<1x32xf32>
    %11 = vector.broadcast %10 : vector<1x32xf32> to vector<8x32xf32>
    %12 = arith.addf %9, %11 : vector<8x32xf32>
    %cst_11 = arith.constant 0.000000e+00 : f32
    %13 = vector.broadcast %cst_11 : f32 to vector<8x32xf32>
    %14 = arith.maximumf %12, %13 : vector<8x32xf32>
    %c0_12 = arith.constant 0 : index
    %c0_13 = arith.constant 0 : index
    %15 = vector.load %arg6[%c0_12, %c0_13] : memref<32x4xf32, #tpu.memory_space<vmem>>, vector<32x4xf32>
    %cst_14 = arith.constant dense<0.000000e+00> : vector<8x4xf32>
    %16 = tpu.matmul %14, %15, %cst_14 {dimension_numbers = #tpu.dot_dimension_numbers<[1], [0], [0], [1], [0, 0, 1, 1], [], []>} : vector<8x32xf32>, vector<32x4xf32>, vector<8x4xf32> -> vector<8x4xf32>
    %c0_15 = arith.constant 0 : index
    %c0_16 = arith.constant 0 : index
    %17 = vector.load %arg7[%c0_15, %c0_16] : memref<1x4xf32, #tpu.memory_space<vmem>>, vector<1x4xf32>
    %18 = vector.broadcast %17 : vector<1x4xf32> to vector<8x4xf32>
    %19 = arith.addf %16, %18 : vector<8x4xf32>
    %c0_17 = arith.constant 0 : index
    %c0_18 = arith.constant 0 : index
    %20 = vector.load %arg8[%c0_17, %c0_18] : memref<8x4xf32, #tpu.memory_space<vmem>>, vector<8x4xf32>
    tpu.vector_store %arg8[%c0_17, %c0_18], %19 {strides = array<i32>} : memref<8x4xf32, #tpu.memory_space<vmem>>, vector<8x4xf32>,
    return
  }
  func.func @transform_0(%arg0: i32) -> (i32, i32) {
    %c0_i32 = arith.constant 0 : i32
    %c0_i32_0 = arith.constant 0 : i32
    return %arg0, %c0_i32 : i32, i32
  }
  func.func @transform_1(%arg0: i32) -> (i32, i32) {
    %c0_i32 = arith.constant 0 : i32
    %c0_i32_0 = arith.constant 0 : i32
    %c0_i32_1 = arith.constant 0 : i32
    return %c0_i32, %c0_i32_0 : i32, i32
  }
  func.func @transform_2(%arg0: i32) -> (i32, i32) {
    %c0_i32 = arith.constant 0 : i32
    %c0_i32_0 = arith.constant 0 : i32
    %c0_i32_1 = arith.constant 0 : i32
    return %c0_i32, %c0_i32_0 : i32, i32
  }
  func.func @transform_3(%arg0: i32) -> (i32, i32) {
    %c0_i32 = arith.constant 0 : i32
    %c0_i32_0 = arith.constant 0 : i32
    %c0_i32_1 = arith.constant 0 : i32
    return %c0_i32, %c0_i32_0 : i32, i32
  }
  func.func @transform_4(%arg0: i32) -> (i32, i32) {
    %c0_i32 = arith.constant 0 : i32
    %c0_i32_0 = arith.constant 0 : i32
    %c0_i32_1 = arith.constant 0 : i32
    return %c0_i32, %c0_i32_0 : i32, i32
  }
  func.func @transform_5(%arg0: i32) -> (i32, i32) {
    %c0_i32 = arith.constant 0 : i32
    %c0_i32_0 = arith.constant 0 : i32
    %c0_i32_1 = arith.constant 0 : i32
    return %c0_i32, %c0_i32_0 : i32, i32
  }
  func.func @transform_6(%arg0: i32) -> (i32, i32) {
    %c0_i32 = arith.constant 0 : i32
    %c0_i32_0 = arith.constant 0 : i32
    %c0_i32_1 = arith.constant 0 : i32
    return %c0_i32, %c0_i32_0 : i32, i32
  }
  func.func @transform_7(%arg0: i32) -> (i32, i32) {
    %c0_i32 = arith.constant 0 : i32
    %c0_i32_0 = arith.constant 0 : i32
    return %arg0, %c0_i32 : i32, i32
  }
}

</mosaic_0001>

<llo_original>
// kernel: qnetwork_forward.1
$region0: #{qnetwork_forward.1}
  #allocation0 [shape = 'u32[]', space=smem, size = 0x4, offset = 0x4, fixed_abs, tag = 'smem constant byte address 0x4 - core index']
  #allocation1 [shape = 'u32[144,128]{1,0:T(1,128)}', space=vmem, size = 0x12000, scoped, tag = 'internal scratch']
  %s0 = inlined_call_operand.vmem [shape: f32[2,8], index: 0, kind: input, shape index: {}]
  %s1 = inlined_call_operand.vmem [shape: f32[8,64], index: 1, kind: input, shape index: {}]
  %s2 = inlined_call_operand.vmem [shape: f32[1,64], index: 2, kind: input, shape index: {}]
  %s3 = inlined_call_operand.vmem [shape: f32[64,32], index: 3, kind: input, shape index: {}]
  %s4 = inlined_call_operand.vmem [shape: f32[1,32], index: 4, kind: input, shape index: {}]
  %s5 = inlined_call_operand.vmem [shape: f32[32,4], index: 5, kind: input, shape index: {}]
  %s6 = inlined_call_operand.vmem [shape: f32[1,4], index: 6, kind: input, shape index: {}]
  %s7 = inlined_call_operand.hbm [shape: f32[2,4], index: 7, kind: output, shape index: {}]
  %s8 = sld [smem:[#allocation0]]
  $region38: #{qnetwork_forward.1} parent=0
    _
  %s10 = ssub.s32 1, %s8
  %s11 = scalar_select 0, %s10, %s8
  $region1: #{qnetwork_forward.1} parent=0
    #allocation2 [shape = 'u8[4096]{0}', space=vmem, size = 0x1000, scoped, tag = 'output window, operand 0, single buffered']
    #allocation3 [shape = 's32[1]{0}', space=sflag, size = 0x4, scoped, tag = 'scoped memory for qnetwork_forward.1']
    %12 = vsyncpa [#allocation3], 0
    // Predicated region
    $region2: #{qnetwork_forward.1} parent=1 // pred_check
      _
    $region3: #{qnetwork_forward.1} parent=1 // pred_check_branch
      %14 = sbr.rel (0) target = $region5
    $region4: #{qnetwork_forward.1} parent=1 // pred_region
      _
    $region5: #{qnetwork_forward.1} parent=1 // pred_fallthru
      _
    // Predicated region
    $region6: #{qnetwork_forward.1} parent=1 // pred_check
      _
    $region7: #{qnetwork_forward.1} parent=1 // pred_check_branch
      %16 = sbr.rel (0) target = $region9
    $region8: #{qnetwork_forward.1} parent=1 // pred_region
      _
    $region9: #{qnetwork_forward.1} parent=1 // pred_fallthru
      _
    // Predicated region
    $region10: #{qnetwork_forward.1} parent=1 // pred_check
      _
    $region11: #{qnetwork_forward.1} parent=1 // pred_check_branch
      %18 = sbr.rel (0) target = $region13
    $region12: #{qnetwork_forward.1} parent=1 // pred_region
      _
    $region13: #{qnetwork_forward.1} parent=1 // pred_fallthru
      _
    // Predicated region
    $region14: #{qnetwork_forward.1} parent=1 // pred_check
      _
    $region15: #{qnetwork_forward.1} parent=1 // pred_check_branch
      %20 = sbr.rel (0) target = $region17
    $region16: #{qnetwork_forward.1} parent=1 // pred_region
      _
    $region17: #{qnetwork_forward.1} parent=1 // pred_fallthru
      _
    // Predicated region
    $region18: #{qnetwork_forward.1} parent=1 // pred_check
      _
    $region19: #{qnetwork_forward.1} parent=1 // pred_check_branch
      %22 = sbr.rel (0) target = $region21
    $region20: #{qnetwork_forward.1} parent=1 // pred_region
      _
    $region21: #{qnetwork_forward.1} parent=1 // pred_fallthru
      _
    // Predicated region
    $region22: #{qnetwork_forward.1} parent=1 // pred_check
      _
    $region23: #{qnetwork_forward.1} parent=1 // pred_check_branch
      %24 = sbr.rel (0) target = $region25
    $region24: #{qnetwork_forward.1} parent=1 // pred_region
      _
    $region25: #{qnetwork_forward.1} parent=1 // pred_fallthru
      _
    // Predicated region
    $region26: #{qnetwork_forward.1} parent=1 // pred_check
      _
    $region27: #{qnetwork_forward.1} parent=1 // pred_check_branch
      %26 = sbr.rel (0) target = $region29
    $region28: #{qnetwork_forward.1} parent=1 // pred_region
      _
    $region29: #{qnetwork_forward.1} parent=1 // pred_fallthru
      _
    %v27 = vld [vmem:[%s0] sm:$0xff]
    %v28 = vld [vmem:[%s1] sm:$0xff]
    %v29 = vld [vmem:[%s2] sm:$0x1]
    %v31 = vlaneseq
    %v32 = vshrl.u32 %v31, 7
    %v33 = vsub.s32 0, %v32
    %v34 = vrot.slane %v29, %v33
    %vm36 = vcmask 64512
    %v38 = vsel %vm36, %v27, 0
    %40 = vmatprep.subr.mxu0 0.0
    %41 = vmatpush1.msra.mxu0 0.0
    %42 = vmatprep.subr.mxu0 0.0
    %43 = vmatpush1.msra.mxu0 0.0
    %44 = vmatprep.subr.mxu0 0.0
    %45 = vmatpush1.msra.mxu0 0.0
    %46 = vmatprep.subr.mxu0 0.0
    %47 = vmatpush1.msra.mxu0 0.0
    %48 = vmatprep.subr.mxu0 0.0
    %49 = vmatpush1.msra.mxu0 0.0
    %50 = vmatprep.subr.mxu0 0.0
    %51 = vmatpush1.msra.mxu0 0.0
    %52 = vmatprep.subr.mxu0 0.0
    %53 = vmatpush1.msra.mxu0 0.0
    %54 = vmatprep.subr.mxu0 0.0
    %55 = vmatpush1.msra.mxu0 0.0
    %56 = vmatprep.subr.mxu0 0.0
    %57 = vmatpush1.msra.mxu0 0.0
    %58 = vmatprep.subr.mxu0 0.0
    %59 = vmatpush1.msra.mxu0 0.0
    %60 = vmatprep.subr.mxu0 0.0
    %61 = vmatpush1.msra.mxu0 0.0
    %62 = vmatprep.subr.mxu0 0.0
    %63 = vmatpush1.msra.mxu0 0.0
    %64 = vmatprep.subr.mxu0 0.0
    %65 = vmatpush1.msra.mxu0 0.0
    %66 = vmatprep.subr.mxu0 0.0
    %67 = vmatpush1.msra.mxu0 0.0
    %68 = vmatprep.subr.mxu0 0.0
    %69 = vmatpush1.msra.mxu0 0.0
    %70 = vmatprep.subr.mxu0 0.0
    %71 = vmatpush1.msra.mxu0 %v28
    %72 = vmatprep.subr.mxu0 0.0
    %73 = vmatpush2.msra.mxu0 0.0
    %74 = vmatprep.subr.mxu0 0.0
    %75 = vmatpush2.msra.mxu0 0.0
    %76 = vmatprep.subr.mxu0 0.0
    %77 = vmatpush2.msra.mxu0 0.0
    %78 = vmatprep.subr.mxu0 0.0
    %79 = vmatpush2.msra.mxu0 0.0
    %80 = vmatprep.subr.mxu0 0.0
    %81 = vmatpush2.msra.mxu0 0.0
    %82 = vmatprep.subr.mxu0 0.0
    %83 = vmatpush2.msra.mxu0 0.0
    %84 = vmatprep.subr.mxu0 0.0
    %85 = vmatpush2.msra.mxu0 0.0
    %86 = vmatprep.subr.mxu0 0.0
    %87 = vmatpush2.msra.mxu0 0.0
    %88 = vmatprep.subr.mxu0 0.0
    %89 = vmatpush2.msra.mxu0 0.0
    %90 = vmatprep.subr.mxu0 0.0
    %91 = vmatpush2.msra.mxu0 0.0
    %92 = vmatprep.subr.mxu0 0.0
    %93 = vmatpush2.msra.mxu0 0.0
    %94 = vmatprep.subr.mxu0 0.0
    %95 = vmatpush2.msra.mxu0 0.0
    %96 = vmatprep.subr.mxu0 0.0
    %97 = vmatpush2.msra.mxu0 0.0
    %98 = vmatprep.subr.mxu0 0.0
    %99 = vmatpush2.msra.mxu0 0.0
    %100 = vmatprep.subr.mxu0 0.0
    %101 = vmatpush2.msra.mxu0 0.0
    %102 = vmatprep.subr.mxu0 0.0
    %103 = vmatpush2.msra.mxu0 0.0
    %104 = vmatprep.mubr.f32.mxu0 0.0
    %105 = vmatmul.mubr.f32.gmra.mxu0 %v38
    %v106 = vpop.f32.mrf.mxu0
    %v107 = vadd.f32 %v34, %v106
    %v108 = vpop.f32.mrf.mxu0
    %109 = vdwg.mxu0
    %v110 = vmax.f32 %v107, 0.0
    %v111 = vld [vmem:[%s3] sm:$0xff]
    %v112 = vld [vmem:[%s3 + $0x8] sm:$0xff]
    %v113 = vld [vmem:[%s3 + $0x10] sm:$0xff]
    %v114 = vld [vmem:[%s3 + $0x18] sm:$0xff]
    %v115 = vld [vmem:[%s3 + $0x20] sm:$0xff]
    %v116 = vld [vmem:[%s3 + $0x28] sm:$0xff]
    %v117 = vld [vmem:[%s3 + $0x30] sm:$0xff]
    %v118 = vld [vmem:[%s3 + $0x38] sm:$0xff]
    %v119 = vld [vmem:[%s4] sm:$0x1]
    %v121 = vlaneseq
    %v122 = vshrl.u32 %v121, 7
    %v123 = vsub.s32 0, %v122
    %v124 = vrot.slane %v119, %v123
    %vm126 = vcmask 523264
    %v128 = vsel %vm126, %v110, 0
    %130 = vmatprep.subr.mxu0 0.0
    %131 = vmatpush1.msra.mxu0 0.0
    %132 = vmatprep.subr.mxu0 0.0
    %133 = vmatpush1.msra.mxu0 0.0
    %134 = vmatprep.subr.mxu0 0.0
    %135 = vmatpush1.msra.mxu0 0.0
    %136 = vmatprep.subr.mxu0 0.0
    %137 = vmatpush1.msra.mxu0 0.0
    %138 = vmatprep.subr.mxu0 0.0
    %139 = vmatpush1.msra.mxu0 0.0
    %140 = vmatprep.subr.mxu0 0.0
    %141 = vmatpush1.msra.mxu0 0.0
    %142 = vmatprep.subr.mxu0 0.0
    %143 = vmatpush1.msra.mxu0 0.0
    %144 = vmatprep.subr.mxu0 0.0
    %145 = vmatpush1.msra.mxu0 0.0
    %146 = vmatprep.subr.mxu0 0.0
    %147 = vmatpush1.msra.mxu0 %v118
    %148 = vmatprep.subr.mxu0 0.0
    %149 = vmatpush1.msra.mxu0 %v117
    %150 = vmatprep.subr.mxu0 0.0
    %151 = vmatpush1.msra.mxu0 %v116
    %152 = vmatprep.subr.mxu0 0.0
    %153 = vmatpush1.msra.mxu0 %v115
    %154 = vmatprep.subr.mxu0 0.0
    %155 = vmatpush1.msra.mxu0 %v114
    %156 = vmatprep.subr.mxu0 0.0
    %157 = vmatpush1.msra.mxu0 %v113
    %158 = vmatprep.subr.mxu0 0.0
    %159 = vmatpush1.msra.mxu0 %v112
    %160 = vmatprep.subr.mxu0 0.0
    %161 = vmatpush1.msra.mxu0 %v111
    %162 = vmatprep.subr.mxu0 0.0
    %163 = vmatpush2.msra.mxu0 0.0
    %164 = vmatprep.subr.mxu0 0.0
    %165 = vmatpush2.msra.mxu0 0.0
    %166 = vmatprep.subr.mxu0 0.0
    %167 = vmatpush2.msra.mxu0 0.0
    %168 = vmatprep.subr.mxu0 0.0
    %169 = vmatpush2.msra.mxu0 0.0
    %170 = vmatprep.subr.mxu0 0.0
    %171 = vmatpush2.msra.mxu0 0.0
    %172 = vmatprep.subr.mxu0 0.0
    %173 = vmatpush2.msra.mxu0 0.0
    %174 = vmatprep.subr.mxu0 0.0
    %175 = vmatpush2.msra.mxu0 0.0
    %176 = vmatprep.subr.mxu0 0.0
    %177 = vmatpush2.msra.mxu0 0.0
    %178 = vmatprep.subr.mxu0 0.0
    %179 = vmatpush2.msra.mxu0 0.0
    %180 = vmatprep.subr.mxu0 0.0
    %181 = vmatpush2.msra.mxu0 0.0
    %182 = vmatprep.subr.mxu0 0.0
    %183 = vmatpush2.msra.mxu0 0.0
    %184 = vmatprep.subr.mxu0 0.0
    %185 = vmatpush2.msra.mxu0 0.0
    %186 = vmatprep.subr.mxu0 0.0
    %187 = vmatpush2.msra.mxu0 0.0
    %188 = vmatprep.subr.mxu0 0.0
    %189 = vmatpush2.msra.mxu0 0.0
    %190 = vmatprep.subr.mxu0 0.0
    %191 = vmatpush2.msra.mxu0 0.0
    %192 = vmatprep.subr.mxu0 0.0
    %193 = vmatpush2.msra.mxu0 0.0
    %194 = vmatprep.mubr.f32.mxu0 0.0
    %195 = vmatmul.mubr.f32.gmra.mxu0 %v128
    %v196 = vpop.f32.mrf.mxu0
    %v197 = vadd.f32 %v124, %v196
    %v198 = vpop.f32.mrf.mxu0
    %199 = vdwg.mxu0
    %v200 = vmax.f32 %v197, 0.0
    %v201 = vld [vmem:[%s5] sm:$0xff]
    %v202 = vld [vmem:[%s5 + $0x8] sm:$0xff]
    %v203 = vld [vmem:[%s5 + $0x10] sm:$0xff]
    %v204 = vld [vmem:[%s5 + $0x18] sm:$0xff]
    %v205 = vld [vmem:[%s6] sm:$0x1]
    %v207 = vlaneseq
    %v208 = vshrl.u32 %v207, 7
    %v209 = vsub.s32 0, %v208
    %v210 = vrot.slane %v205, %v209
    %vm212 = vcmask 261120
    %v214 = vsel %vm212, %v200, 0
    %216 = vmatprep.subr.mxu0 0.0
    %217 = vmatpush1.msra.mxu0 0.0
    %218 = vmatprep.subr.mxu0 0.0
    %219 = vmatpush1.msra.mxu0 0.0
    %220 = vmatprep.subr.mxu0 0.0
    %221 = vmatpush1.msra.mxu0 0.0
    %222 = vmatprep.subr.mxu0 0.0
    %223 = vmatpush1.msra.mxu0 0.0
    %224 = vmatprep.subr.mxu0 0.0
    %225 = vmatpush1.msra.mxu0 0.0
    %226 = vmatprep.subr.mxu0 0.0
    %227 = vmatpush1.msra.mxu0 0.0
    %228 = vmatprep.subr.mxu0 0.0
    %229 = vmatpush1.msra.mxu0 0.0
    %230 = vmatprep.subr.mxu0 0.0
    %231 = vmatpush1.msra.mxu0 0.0
    %232 = vmatprep.subr.mxu0 0.0
    %233 = vmatpush1.msra.mxu0 0.0
    %234 = vmatprep.subr.mxu0 0.0
    %235 = vmatpush1.msra.mxu0 0.0
    %236 = vmatprep.subr.mxu0 0.0
    %237 = vmatpush1.msra.mxu0 0.0
    %238 = vmatprep.subr.mxu0 0.0
    %239 = vmatpush1.msra.mxu0 0.0
    %240 = vmatprep.subr.mxu0 0.0
    %241 = vmatpush1.msra.mxu0 %v204
    %242 = vmatprep.subr.mxu0 0.0
    %243 = vmatpush1.msra.mxu0 %v203
    %244 = vmatprep.subr.mxu0 0.0
    %245 = vmatpush1.msra.mxu0 %v202
    %246 = vmatprep.subr.mxu0 0.0
    %247 = vmatpush1.msra.mxu0 %v201
    %248 = vmatprep.subr.mxu0 0.0
    %249 = vmatpush2.msra.mxu0 0.0
    %250 = vmatprep.subr.mxu0 0.0
    %251 = vmatpush2.msra.mxu0 0.0
    %252 = vmatprep.subr.mxu0 0.0
    %253 = vmatpush2.msra.mxu0 0.0
    %254 = vmatprep.subr.mxu0 0.0
    %255 = vmatpush2.msra.mxu0 0.0
    %256 = vmatprep.subr.mxu0 0.0
    %257 = vmatpush2.msra.mxu0 0.0
    %258 = vmatprep.subr.mxu0 0.0
    %259 = vmatpush2.msra.mxu0 0.0
    %260 = vmatprep.subr.mxu0 0.0
    %261 = vmatpush2.msra.mxu0 0.0
    %262 = vmatprep.subr.mxu0 0.0
    %263 = vmatpush2.msra.mxu0 0.0
    %264 = vmatprep.subr.mxu0 0.0
    %265 = vmatpush2.msra.mxu0 0.0
    %266 = vmatprep.subr.mxu0 0.0
    %267 = vmatpush2.msra.mxu0 0.0
    %268 = vmatprep.subr.mxu0 0.0
    %269 = vmatpush2.msra.mxu0 0.0
    %270 = vmatprep.subr.mxu0 0.0
    %271 = vmatpush2.msra.mxu0 0.0
    %272 = vmatprep.subr.mxu0 0.0
    %273 = vmatpush2.msra.mxu0 0.0
    %274 = vmatprep.subr.mxu0 0.0
    %275 = vmatpush2.msra.mxu0 0.0
    %276 = vmatprep.subr.mxu0 0.0
    %277 = vmatpush2.msra.mxu0 0.0
    %278 = vmatprep.subr.mxu0 0.0
    %279 = vmatpush2.msra.mxu0 0.0
    %280 = vmatprep.mubr.f32.mxu0 0.0
    %281 = vmatmul.mubr.f32.gmra.mxu0 %v214
    %v282 = vpop.f32.mrf.mxu0
    %v283 = vadd.f32 %v210, %v282
    %v284 = vpop.f32.mrf.mxu0
    %285 = vdwg.mxu0
    %vm286 = vcmask 31744
    %287 = vst.msk [vmem:[#allocation2] sm:$0xff] %vm286, %v283
    // Predicated region
    $region30: #{qnetwork_forward.1} parent=1 // pred_check
      _
    $region31: #{qnetwork_forward.1} parent=1 // pred_check_branch
      %289 = sbr.rel (0) target = $region33
    $region32: #{qnetwork_forward.1} parent=1 // pred_region
      %s291 = ssub.s32 128, 32
      %292 = vsyncadd [#allocation3], %s291
      %s293 = sshll.u32 [#allocation2], 4
      %s294 = int_to_ptr.vmem [resolvable:$true] %s293
      %299 = dma.vmem_to_hbm [thread:$0]  %s294, 32, %s7, [#allocation3], 32, 32, 2
    $region33: #{qnetwork_forward.1} parent=1 // pred_fallthru
      _
    // Predicated region
    $region34: #{qnetwork_forward.1} parent=1 // pred_check
      _
    $region35: #{qnetwork_forward.1} parent=1 // pred_check_branch
      %301 = sbr.rel (0) target = $region37
    $region36: #{qnetwork_forward.1} parent=1 // pred_region
      %302 = dma.done [#allocation3], 128
    $region37: #{qnetwork_forward.1} parent=1 // pred_fallthru
      _
    %303 = vsyncpa [#allocation3], 1

</llo_original>
